<compile_context>
chip_gen: v6e
topology: v6e:2x2x1
jax: 0.10.0
libtpu: 0.0.40
codegen_flags: <defaults>
</compile_context>

<pallas_src>
import math

import jax
import jax.numpy as jnp
from jax.experimental import pallas as pl
from jax.experimental.pallas import tpu as pltpu

_BN_EPS = 1e-5
_LANE = 128


def _round_up(n, m):
    return ((n + m - 1) // m) * m


def _make_fused_mlp_kernel(num_layers):
    """Build a kernel chaining `num_layers` Linear -> BN(train) -> ReLU layers.

    Ref layout: (x_ref, [w_ref, gamma_ref, beta_ref] * num_layers, o_ref).
    Parameters are pre-transposed to (n_in, n_out) and zero-padded to
    lane-dense (multiple-of-128) output widths; padded columns have
    gamma = beta = 0 so they stay exactly zero through every layer.
    """

    def kernel(*refs):
        x_ref = refs[0]
        o_ref = refs[-1]
        param_refs = refs[1:-1]

        h = x_ref[...]
        inv_n = 1.0 / h.shape[0]
        for i in range(num_layers):
            w_ref, gamma_ref, beta_ref = param_refs[3 * i: 3 * i + 3]
            # Linear (bias omitted: exactly cancelled by the BN mean subtract).
            y = jnp.dot(h, w_ref[...], preferred_element_type=jnp.float32)
            # BatchNorm1d, training-mode statistics (biased variance over batch).
            mean = jnp.sum(y, axis=0, keepdims=True) * inv_n
            centered = y - mean
            var = jnp.sum(centered * centered, axis=0, keepdims=True) * inv_n
            scale = gamma_ref[...] * jax.lax.rsqrt(var + _BN_EPS)
            # Fused scale/shift + ReLU.
            h = jnp.maximum(centered * scale + beta_ref[...], 0.0)
        o_ref[...] = h

    return kernel


def init_scmdcf_mlp_params(key, layers):
    """PyTorch-layout parameters (W: (n_out, n_in); default Linear / BN init)."""
    params = []
    for n_in, n_out in zip(layers[:-1], layers[1:]):
        key, kw, kb = jax.random.split(key, 3)
        bound = 1.0 / math.sqrt(n_in)
        params.append({
            "w": jax.random.uniform(kw, (n_out, n_in), jnp.float32, -bound, bound),
            "b": jax.random.uniform(kb, (n_out,), jnp.float32, -bound, bound),
            "gamma": jnp.ones((n_out,), jnp.float32),
            "beta": jnp.zeros((n_out,), jnp.float32),
        })
    return params


def pack_params_for_kernel(params):
    """One-time packing: transpose W to (n_in, n_out) and zero-pad hidden /
    output widths to multiples of 128 (lane-dense). The Linear bias is not
    packed because training-mode BN's mean subtraction cancels it exactly.
    """
    packed = []
    pad_in = params[0]["w"].shape[1]  # first input width stays unpadded
    for p in params:
        n_out, n_in = p["w"].shape
        pad_out = _round_up(n_out, _LANE)
        w_t = jnp.zeros((pad_in, pad_out), jnp.float32)
        w_t = w_t.at[:n_in, :n_out].set(p["w"].T)
        gamma = jnp.zeros((1, pad_out), jnp.float32).at[0, :n_out].set(p["gamma"])
        beta = jnp.zeros((1, pad_out), jnp.float32).at[0, :n_out].set(p["beta"])
        packed.append((w_t, gamma, beta))
        pad_in = pad_out
    return packed


def scmdcf_mlp_forward(feature, packed_params, out_dim):
    """Forward pass: one fused Pallas kernel over the whole layer stack."""
    x = feature.astype(jnp.float32)
    n = x.shape[0]

    flat_args = [x]
    in_specs = [pl.BlockSpec(x.shape, lambda: (0, 0))]
    for w_t, gamma, beta in packed_params:
        for a in (w_t, gamma, beta):
            flat_args.append(a)
            in_specs.append(pl.BlockSpec(a.shape, lambda: (0, 0)))

    padded_out = packed_params[-1][0].shape[1]
    out_padded = pl.pallas_call(
        _make_fused_mlp_kernel(len(packed_params)),
        out_shape=jax.ShapeDtypeStruct((n, padded_out), jnp.float32),
        in_specs=in_specs,
        out_specs=pl.BlockSpec((n, padded_out), lambda: (0, 0)),
        compiler_params=pltpu.CompilerParams(vmem_limit_bytes=32 * 1024 * 1024),
    )(*flat_args)
    # Strip lane padding once, at the very end.
    return out_padded[:, :out_dim]


def _reference_forward(feature, params):
    """Pure-JAX reference with the exact PyTorch semantics (incl. bias)."""
    h = feature.astype(jnp.float32)
    for p in params:
        y = h @ p["w"].T + p["b"]
        mean = jnp.mean(y, axis=0, keepdims=True)
        var = jnp.mean((y - mean) ** 2, axis=0, keepdims=True)
        y = (y - mean) / jnp.sqrt(var + _BN_EPS) * p["gamma"] + p["beta"]
        h = jnp.maximum(y, 0.0)
    return h


if __name__ == "__main__":
    key = jax.random.PRNGKey(0)
    k_in, k_params = jax.random.split(key)

    # Small MLP: layers = [32, 64, 16]; batch = 8 (BatchNorm1d needs batch > 1).
    layers = [32, 64, 16]
    batch = 8

    feature = jax.random.normal(k_in, (batch, layers[0]), jnp.float32)
    params = init_scmdcf_mlp_params(k_params, layers)
    packed = pack_params_for_kernel(params)  # one-time transpose + pad

    out = scmdcf_mlp_forward(feature, packed, layers[-1])
    out = jax.block_until_ready(out)

    assert out.shape == (batch, layers[-1])
    assert bool(jnp.all(out >= 0.0))  # ReLU output is non-negative

    ref = _reference_forward(feature, params)
    max_err = float(jnp.max(jnp.abs(out - ref)))
    assert bool(jnp.allclose(out, ref, atol=1e-2, rtol=1e-2)), max_err

    print("KERNEL_OK")
</pallas_src>

<mosaic_0001>
module attributes {stable_mosaic.version = 11 : i64} {
  func.func @kernel(%arg0: memref<8x32xf32, #tpu.memory_space<vmem>>, %arg1: memref<32x128xf32, #tpu.memory_space<vmem>>, %arg2: memref<1x128xf32, #tpu.memory_space<vmem>>, %arg3: memref<1x128xf32, #tpu.memory_space<vmem>>, %arg4: memref<128x128xf32, #tpu.memory_space<vmem>>, %arg5: memref<1x128xf32, #tpu.memory_space<vmem>>, %arg6: memref<1x128xf32, #tpu.memory_space<vmem>>, %arg7: memref<8x128xf32, #tpu.memory_space<vmem>>) attributes {dimension_semantics = [], scalar_prefetch = 0 : i64, scratch_operands = 0 : i64, tpu.core_type = #tpu.core_type<tc>} {
    %c0 = arith.constant 0 : index
    %c0_0 = arith.constant 0 : index
    %0 = vector.load %arg0[%c0, %c0_0] : memref<8x32xf32, #tpu.memory_space<vmem>>, vector<8x32xf32>
    %c0_1 = arith.constant 0 : index
    %c0_2 = arith.constant 0 : index
    %1 = vector.load %arg1[%c0_1, %c0_2] : memref<32x128xf32, #tpu.memory_space<vmem>>, vector<32x128xf32>
    %cst = arith.constant dense<0.000000e+00> : vector<8x128xf32>
    %2 = tpu.matmul %0, %1, %cst {dimension_numbers = #tpu.dot_dimension_numbers<[1], [0], [0], [1], [0, 0, 1, 1], [], []>} : vector<8x32xf32>, vector<32x128xf32>, vector<8x128xf32> -> vector<8x128xf32>
    %cst_3 = arith.constant dense<0.000000e+00> : vector<128xf32>
    %3 = vector.multi_reduction <add>, %2, %cst_3 [0] : vector<8x128xf32> to vector<128xf32>
    %4 = vector.shape_cast %3 : vector<128xf32> to vector<1x128xf32>
    %cst_4 = arith.constant 1.250000e-01 : f32
    %5 = vector.broadcast %cst_4 : f32 to vector<1x128xf32>
    %6 = arith.mulf %4, %5 : vector<1x128xf32>
    %7 = vector.broadcast %6 : vector<1x128xf32> to vector<8x128xf32>
    %8 = arith.subf %2, %7 : vector<8x128xf32>
    %9 = arith.mulf %8, %8 : vector<8x128xf32>
    %cst_5 = arith.constant dense<0.000000e+00> : vector<128xf32>
    %10 = vector.multi_reduction <add>, %9, %cst_5 [0] : vector<8x128xf32> to vector<128xf32>
    %11 = vector.shape_cast %10 : vector<128xf32> to vector<1x128xf32>
    %cst_6 = arith.constant 1.250000e-01 : f32
    %12 = vector.broadcast %cst_6 : f32 to vector<1x128xf32>
    %13 = arith.mulf %11, %12 : vector<1x128xf32>
    %c0_7 = arith.constant 0 : index
    %c0_8 = arith.constant 0 : index
    %14 = vector.load %arg2[%c0_7, %c0_8] : memref<1x128xf32, #tpu.memory_space<vmem>>, vector<1x128xf32>
    %cst_9 = arith.constant 9.99999974E-6 : f32
    %15 = vector.broadcast %cst_9 : f32 to vector<1x128xf32>
    %16 = arith.addf %13, %15 : vector<1x128xf32>
    %17 = math.rsqrt %16 : vector<1x128xf32>
    %18 = arith.mulf %14, %17 : vector<1x128xf32>
    %19 = vector.broadcast %18 : vector<1x128xf32> to vector<8x128xf32>
    %20 = arith.mulf %8, %19 : vector<8x128xf32>
    %c0_10 = arith.constant 0 : index
    %c0_11 = arith.constant 0 : index
    %21 = vector.load %arg3[%c0_10, %c0_11] : memref<1x128xf32, #tpu.memory_space<vmem>>, vector<1x128xf32>
    %22 = vector.broadcast %21 : vector<1x128xf32> to vector<8x128xf32>
    %23 = arith.addf %20, %22 : vector<8x128xf32>
    %cst_12 = arith.constant 0.000000e+00 : f32
    %24 = vector.broadcast %cst_12 : f32 to vector<8x128xf32>
    %25 = arith.maximumf %23, %24 : vector<8x128xf32>
    %c0_13 = arith.constant 0 : index
    %c0_14 = arith.constant 0 : index
    %26 = vector.load %arg4[%c0_13, %c0_14] : memref<128x128xf32, #tpu.memory_space<vmem>>, vector<128x128xf32>
    %cst_15 = arith.constant dense<0.000000e+00> : vector<8x128xf32>
    %27 = tpu.matmul %25, %26, %cst_15 {dimension_numbers = #tpu.dot_dimension_numbers<[1], [0], [0], [1], [0, 0, 1, 1], [], []>} : vector<8x128xf32>, vector<128x128xf32>, vector<8x128xf32> -> vector<8x128xf32>
    %cst_16 = arith.constant dense<0.000000e+00> : vector<128xf32>
    %28 = vector.multi_reduction <add>, %27, %cst_16 [0] : vector<8x128xf32> to vector<128xf32>
    %29 = vector.shape_cast %28 : vector<128xf32> to vector<1x128xf32>
    %cst_17 = arith.constant 1.250000e-01 : f32
    %30 = vector.broadcast %cst_17 : f32 to vector<1x128xf32>
    %31 = arith.mulf %29, %30 : vector<1x128xf32>
    %32 = vector.broadcast %31 : vector<1x128xf32> to vector<8x128xf32>
    %33 = arith.subf %27, %32 : vector<8x128xf32>
    %34 = arith.mulf %33, %33 : vector<8x128xf32>
    %cst_18 = arith.constant dense<0.000000e+00> : vector<128xf32>
    %35 = vector.multi_reduction <add>, %34, %cst_18 [0] : vector<8x128xf32> to vector<128xf32>
    %36 = vector.shape_cast %35 : vector<128xf32> to vector<1x128xf32>
    %cst_19 = arith.constant 1.250000e-01 : f32
    %37 = vector.broadcast %cst_19 : f32 to vector<1x128xf32>
    %38 = arith.mulf %36, %37 : vector<1x128xf32>
    %c0_20 = arith.constant 0 : index
    %c0_21 = arith.constant 0 : index
    %39 = vector.load %arg5[%c0_20, %c0_21] : memref<1x128xf32, #tpu.memory_space<vmem>>, vector<1x128xf32>
    %cst_22 = arith.constant 9.99999974E-6 : f32
    %40 = vector.broadcast %cst_22 : f32 to vector<1x128xf32>
    %41 = arith.addf %38, %40 : vector<1x128xf32>
    %42 = math.rsqrt %41 : vector<1x128xf32>
    %43 = arith.mulf %39, %42 : vector<1x128xf32>
    %44 = vector.broadcast %43 : vector<1x128xf32> to vector<8x128xf32>
    %45 = arith.mulf %33, %44 : vector<8x128xf32>
    %c0_23 = arith.constant 0 : index
    %c0_24 = arith.constant 0 : index
    %46 = vector.load %arg6[%c0_23, %c0_24] : memref<1x128xf32, #tpu.memory_space<vmem>>, vector<1x128xf32>
    %47 = vector.broadcast %46 : vector<1x128xf32> to vector<8x128xf32>
    %48 = arith.addf %45, %47 : vector<8x128xf32>
    %cst_25 = arith.constant 0.000000e+00 : f32
    %49 = vector.broadcast %cst_25 : f32 to vector<8x128xf32>
    %50 = arith.maximumf %48, %49 : vector<8x128xf32>
    %c0_26 = arith.constant 0 : index
    %c0_27 = arith.constant 0 : index
    %51 = vector.load %arg7[%c0_26, %c0_27] : memref<8x128xf32, #tpu.memory_space<vmem>>, vector<8x128xf32>
    tpu.vector_store %arg7[%c0_26, %c0_27], %50 {strides = array<i32>} : memref<8x128xf32, #tpu.memory_space<vmem>>, vector<8x128xf32>,
    return
  }
}

</mosaic_0001>

<llo_original>
// kernel: tpu_custom_call.1
$region0: #{tpu_custom_call.1}
  #allocation0 [shape = 'u32[]', space=smem, size = 0x4, offset = 0x4, fixed_abs, tag = 'smem constant byte address 0x4 - core index']
  #allocation1 [shape = 'u32[144,128]{1,0:T(1,128)}', space=vmem, size = 0x12000, scoped, tag = 'internal scratch']
  %s0 = inlined_call_operand.hbm [shape: f32[8,32], index: 0, kind: input, shape index: {}]
  %s1 = inlined_call_operand.hbm [shape: f32[32,128], index: 1, kind: input, shape index: {}]
  %s2 = inlined_call_operand.vmem [shape: f32[1,128], index: 2, kind: input, shape index: {}]
  %s3 = inlined_call_operand.vmem [shape: f32[1,128], index: 3, kind: input, shape index: {}]
  %s4 = inlined_call_operand.hbm [shape: f32[128,128], index: 4, kind: input, shape index: {}]
  %s5 = inlined_call_operand.vmem [shape: f32[1,128], index: 5, kind: input, shape index: {}]
  %s6 = inlined_call_operand.vmem [shape: f32[1,128], index: 6, kind: input, shape index: {}]
  %s7 = inlined_call_operand.hbm [shape: f32[8,128], index: 7, kind: output, shape index: {}]
  %s8 = sld [smem:[#allocation0]]
  $region50: #{tpu_custom_call.1} parent=0
    _
  %s10 = ssub.s32 1, %s8
  %s11 = scalar_select 0, %s10, %s8
  $region1: #{tpu_custom_call.1} parent=0
    #allocation2 [shape = 'u8[4096]{0}', space=vmem, size = 0x1000, scoped, tag = 'input window, operand 0, single buffered']
    #allocation3 [shape = 's32[1]{0}', space=sflag, size = 0x4, scoped, tag = 'scoped memory for tpu_custom_call.1']
    #allocation4 [shape = 's32[1]{0}', space=sflag, size = 0x4, scoped, tag = 'scoped memory for tpu_custom_call.1']
    #allocation5 [shape = 'u8[16384]{0}', space=vmem, size = 0x4000, scoped, tag = 'input window, operand 1, single buffered']
    #allocation6 [shape = 's32[1]{0}', space=sflag, size = 0x4, scoped, tag = 'scoped memory for tpu_custom_call.1']
    #allocation7 [shape = 'u8[65536]{0}', space=vmem, size = 0x10000, scoped, tag = 'input window, operand 4, single buffered']
    #allocation8 [shape = 'u8[4096]{0}', space=vmem, size = 0x1000, scoped, tag = 'output window, operand 0, single buffered']
    %12 = vsyncpa [#allocation3], 0
    %13 = vsyncpa [#allocation6], 0
    %14 = vsyncpa [#allocation4], 0
    // Predicated region
    $region2: #{tpu_custom_call.1} parent=1 // pred_check
      _
    $region3: #{tpu_custom_call.1} parent=1 // pred_check_branch
      %16 = sbr.rel (0) target = $region5
    $region4: #{tpu_custom_call.1} parent=1 // pred_region
      %s18 = ssub.s32 128, 128
      %19 = vsyncadd [#allocation3], %s18
      %s21 = sshll.u32 [#allocation2], 4
      %s22 = int_to_ptr.vmem [resolvable:$true] %s21
      %24 = dma.hbm_to_vmem [thread:$0]  %s0, 128, %s22, [#allocation3]
    $region5: #{tpu_custom_call.1} parent=1 // pred_fallthru
      _
    // Predicated region
    $region6: #{tpu_custom_call.1} parent=1 // pred_check
      _
    $region7: #{tpu_custom_call.1} parent=1 // pred_check_branch
      %26 = sbr.rel (0) target = $region9
    $region8: #{tpu_custom_call.1} parent=1 // pred_region
      %s28 = ssub.s32 512, 512
      %29 = vsyncadd [#allocation6], %s28
      %s30 = sshll.u32 [#allocation5], 4
      %s31 = int_to_ptr.vmem [resolvable:$true] %s30
      %36 = dma.hbm_to_vmem [thread:$0]  %s1, 512, %s31, [#allocation6], 128, 128, 8
    $region9: #{tpu_custom_call.1} parent=1 // pred_fallthru
      _
    // Predicated region
    $region10: #{tpu_custom_call.1} parent=1 // pred_check
      _
    $region11: #{tpu_custom_call.1} parent=1 // pred_check_branch
      %38 = sbr.rel (0) target = $region13
    $region12: #{tpu_custom_call.1} parent=1 // pred_region
      _
    $region13: #{tpu_custom_call.1} parent=1 // pred_fallthru
      _
    // Predicated region
    $region14: #{tpu_custom_call.1} parent=1 // pred_check
      _
    $region15: #{tpu_custom_call.1} parent=1 // pred_check_branch
      %40 = sbr.rel (0) target = $region17
    $region16: #{tpu_custom_call.1} parent=1 // pred_region
      _
    $region17: #{tpu_custom_call.1} parent=1 // pred_fallthru
      _
    // Predicated region
    $region18: #{tpu_custom_call.1} parent=1 // pred_check
      _
    $region19: #{tpu_custom_call.1} parent=1 // pred_check_branch
      %42 = sbr.rel (0) target = $region21
    $region20: #{tpu_custom_call.1} parent=1 // pred_region
      %s44 = ssub.s32 2048, 2048
      %45 = vsyncadd [#allocation6], %s44
      %s46 = sshll.u32 [#allocation7], 4
      %s47 = int_to_ptr.vmem [resolvable:$true] %s46
      %52 = dma.hbm_to_vmem [thread:$0]  %s4, 2048, %s47, [#allocation6], 128, 128, 8
    $region21: #{tpu_custom_call.1} parent=1 // pred_fallthru
      _
    // Predicated region
    $region22: #{tpu_custom_call.1} parent=1 // pred_check
      _
    $region23: #{tpu_custom_call.1} parent=1 // pred_check_branch
      %54 = sbr.rel (0) target = $region25
    $region24: #{tpu_custom_call.1} parent=1 // pred_region
      _
    $region25: #{tpu_custom_call.1} parent=1 // pred_fallthru
      _
    // Predicated region
    $region26: #{tpu_custom_call.1} parent=1 // pred_check
      _
    $region27: #{tpu_custom_call.1} parent=1 // pred_check_branch
      %56 = sbr.rel (0) target = $region29
    $region28: #{tpu_custom_call.1} parent=1 // pred_region
      _
    $region29: #{tpu_custom_call.1} parent=1 // pred_fallthru
      _
    // Predicated region
    $region30: #{tpu_custom_call.1} parent=1 // pred_check
      _
    $region31: #{tpu_custom_call.1} parent=1 // pred_check_branch
      %58 = sbr.rel (0) target = $region33
    $region32: #{tpu_custom_call.1} parent=1 // pred_region
      %59 = dma.done [#allocation3], 128
    $region33: #{tpu_custom_call.1} parent=1 // pred_fallthru
      _
    // Predicated region
    $region34: #{tpu_custom_call.1} parent=1 // pred_check
      _
    $region35: #{tpu_custom_call.1} parent=1 // pred_check_branch
      %61 = sbr.rel (0) target = $region37
    $region36: #{tpu_custom_call.1} parent=1 // pred_region
      %62 = dma.done [#allocation6], 512
    $region37: #{tpu_custom_call.1} parent=1 // pred_fallthru
      _
    // Predicated region
    $region38: #{tpu_custom_call.1} parent=1 // pred_check
      _
    $region39: #{tpu_custom_call.1} parent=1 // pred_check_branch
      %64 = sbr.rel (0) target = $region41
    $region40: #{tpu_custom_call.1} parent=1 // pred_region
      %65 = dma.done [#allocation6], 2048
    $region41: #{tpu_custom_call.1} parent=1 // pred_fallthru
      _
    %v66 = vld [vmem:[#allocation2] sm:$0xff]
    %v67 = vld [vmem:[#allocation5] sm:$0xff]
    %v68 = vld [vmem:[#allocation5 + $0x8] sm:$0xff]
    %v69 = vld [vmem:[#allocation5 + $0x10] sm:$0xff]
    %v70 = vld [vmem:[#allocation5 + $0x18] sm:$0xff]
    %vm71 = vcmask 261120
    %v73 = vsel %vm71, %v66, 0
    %75 = vmatprep.subr.mxu0 0.0
    %76 = vmatpush1.msra.mxu0 0.0
    %77 = vmatprep.subr.mxu0 0.0
    %78 = vmatpush1.msra.mxu0 0.0
    %79 = vmatprep.subr.mxu0 0.0
    %80 = vmatpush1.msra.mxu0 0.0
    %81 = vmatprep.subr.mxu0 0.0
    %82 = vmatpush1.msra.mxu0 0.0
    %83 = vmatprep.subr.mxu0 0.0
    %84 = vmatpush1.msra.mxu0 0.0
    %85 = vmatprep.subr.mxu0 0.0
    %86 = vmatpush1.msra.mxu0 0.0
    %87 = vmatprep.subr.mxu0 0.0
    %88 = vmatpush1.msra.mxu0 0.0
    %89 = vmatprep.subr.mxu0 0.0
    %90 = vmatpush1.msra.mxu0 0.0
    %91 = vmatprep.subr.mxu0 0.0
    %92 = vmatpush1.msra.mxu0 0.0
    %93 = vmatprep.subr.mxu0 0.0
    %94 = vmatpush1.msra.mxu0 0.0
    %95 = vmatprep.subr.mxu0 0.0
    %96 = vmatpush1.msra.mxu0 0.0
    %97 = vmatprep.subr.mxu0 0.0
    %98 = vmatpush1.msra.mxu0 0.0
    %99 = vmatprep.subr.mxu0 0.0
    %100 = vmatpush1.msra.mxu0 %v70
    %101 = vmatprep.subr.mxu0 0.0
    %102 = vmatpush1.msra.mxu0 %v69
    %103 = vmatprep.subr.mxu0 0.0
    %104 = vmatpush1.msra.mxu0 %v68
    %105 = vmatprep.subr.mxu0 0.0
    %106 = vmatpush1.msra.mxu0 %v67
    %107 = vmatprep.subr.mxu0 0.0
    %108 = vmatpush2.msra.mxu0 0.0
    %109 = vmatprep.subr.mxu0 0.0
    %110 = vmatpush2.msra.mxu0 0.0
    %111 = vmatprep.subr.mxu0 0.0
    %112 = vmatpush2.msra.mxu0 0.0
    %113 = vmatprep.subr.mxu0 0.0
    %114 = vmatpush2.msra.mxu0 0.0
    %115 = vmatprep.subr.mxu0 0.0
    %116 = vmatpush2.msra.mxu0 0.0
    %117 = vmatprep.subr.mxu0 0.0
    %118 = vmatpush2.msra.mxu0 0.0
    %119 = vmatprep.subr.mxu0 0.0
    %120 = vmatpush2.msra.mxu0 0.0
    %121 = vmatprep.subr.mxu0 0.0
    %122 = vmatpush2.msra.mxu0 0.0
    %123 = vmatprep.subr.mxu0 0.0
    %124 = vmatpush2.msra.mxu0 0.0
    %125 = vmatprep.subr.mxu0 0.0
    %126 = vmatpush2.msra.mxu0 0.0
    %127 = vmatprep.subr.mxu0 0.0
    %128 = vmatpush2.msra.mxu0 0.0
    %129 = vmatprep.subr.mxu0 0.0
    %130 = vmatpush2.msra.mxu0 0.0
    %131 = vmatprep.subr.mxu0 0.0
    %132 = vmatpush2.msra.mxu0 0.0
    %133 = vmatprep.subr.mxu0 0.0
    %134 = vmatpush2.msra.mxu0 0.0
    %135 = vmatprep.subr.mxu0 0.0
    %136 = vmatpush2.msra.mxu0 0.0
    %137 = vmatprep.subr.mxu0 0.0
    %138 = vmatpush2.msra.mxu0 0.0
    %139 = vmatprep.mubr.f32.mxu0 0.0
    %140 = vmatmul.mubr.f32.gmra.mxu0 %v73
    %v141 = vpop.f32.mrf.mxu0
    %v142 = vadd.f32 0.0, %v141
    %v143 = vpop.f32.mrf.mxu0
    %144 = vdwg.mxu0
    %v145 = vrot.slane %v142, 4
    %v146 = vadd.f32 %v142, %v145
    %v147 = vrot.slane %v146, 2
    %v148 = vadd.f32 %v146, %v147
    %v149 = vrot.slane %v148, 1
    %v150 = vadd.f32 %v148, %v149
    %v151 = vmul.f32 %v150, 0.125
    %v152 = vsub.f32 %v142, %v151
    %v153 = vmul.f32 %v152, %v152
    %v154 = vrot.slane %v153, 4
    %v155 = vadd.f32 %v153, %v154
    %v156 = vrot.slane %v155, 2
    %v157 = vadd.f32 %v155, %v156
    %v158 = vrot.slane %v157, 1
    %v159 = vadd.f32 %v157, %v158
    %v160 = vmul.f32 %v159, 0.125
    %v161 = vld [vmem:[%s2] sm:$0x1]
    %v162 = vadd.f32 %v160, 1e-05
    %v163 = vrsqrt.pop %v162
    %v164 = vmul.f32 %v161, %v163
    %v166 = vlaneseq
    %v167 = vshrl.u32 %v166, 7
    %v168 = vsub.s32 0, %v167
    %v169 = vrot.slane %v164, %v168
    %v171 = vmul.f32 %v152, %v169
    %v172 = vld [vmem:[%s3] sm:$0x1]
    %v174 = vlaneseq
    %v175 = vshrl.u32 %v174, 7
    %v176 = vsub.s32 0, %v175
    %v177 = vrot.slane %v172, %v176
    %v179 = vadd.f32 %v171, %v177
    %v180 = vmax.f32 %v179, 0.0
    %v181 = vld [vmem:[#allocation7] sm:$0xff]
    %v182 = vld [vmem:[#allocation7 + $0x8] sm:$0xff]
    %v183 = vld [vmem:[#allocation7 + $0x10] sm:$0xff]
    %v184 = vld [vmem:[#allocation7 + $0x18] sm:$0xff]
    %v185 = vld [vmem:[#allocation7 + $0x20] sm:$0xff]
    %v186 = vld [vmem:[#allocation7 + $0x28] sm:$0xff]
    %v187 = vld [vmem:[#allocation7 + $0x30] sm:$0xff]
    %v188 = vld [vmem:[#allocation7 + $0x38] sm:$0xff]
    %v189 = vld [vmem:[#allocation7 + $0x40] sm:$0xff]
    %v190 = vld [vmem:[#allocation7 + $0x48] sm:$0xff]
    %v191 = vld [vmem:[#allocation7 + $0x50] sm:$0xff]
    %v192 = vld [vmem:[#allocation7 + $0x58] sm:$0xff]
    %v193 = vld [vmem:[#allocation7 + $0x60] sm:$0xff]
    %v194 = vld [vmem:[#allocation7 + $0x68] sm:$0xff]
    %v195 = vld [vmem:[#allocation7 + $0x70] sm:$0xff]
    %v196 = vld [vmem:[#allocation7 + $0x78] sm:$0xff]
    %197 = vmatprep.subr.mxu0 0.0
    %198 = vmatpush1.msra.mxu0 %v196
    %199 = vmatprep.subr.mxu0 0.0
    %200 = vmatpush1.msra.mxu0 %v195
    %201 = vmatprep.subr.mxu0 0.0
    %202 = vmatpush1.msra.mxu0 %v194
    %203 = vmatprep.subr.mxu0 0.0
    %204 = vmatpush1.msra.mxu0 %v193
    %205 = vmatprep.subr.mxu0 0.0
    %206 = vmatpush1.msra.mxu0 %v192
    %207 = vmatprep.subr.mxu0 0.0
    %208 = vmatpush1.msra.mxu0 %v191
    %209 = vmatprep.subr.mxu0 0.0
    %210 = vmatpush1.msra.mxu0 %v190
    %211 = vmatprep.subr.mxu0 0.0
    %212 = vmatpush1.msra.mxu0 %v189
    %213 = vmatprep.subr.mxu0 0.0
    %214 = vmatpush1.msra.mxu0 %v188
    %215 = vmatprep.subr.mxu0 0.0
    %216 = vmatpush1.msra.mxu0 %v187
    %217 = vmatprep.subr.mxu0 0.0
    %218 = vmatpush1.msra.mxu0 %v186
    %219 = vmatprep.subr.mxu0 0.0
    %220 = vmatpush1.msra.mxu0 %v185
    %221 = vmatprep.subr.mxu0 0.0
    %222 = vmatpush1.msra.mxu0 %v184
    %223 = vmatprep.subr.mxu0 0.0
    %224 = vmatpush1.msra.mxu0 %v183
    %225 = vmatprep.subr.mxu0 0.0
    %226 = vmatpush1.msra.mxu0 %v182
    %227 = vmatprep.subr.mxu0 0.0
    %228 = vmatpush1.msra.mxu0 %v181
    %229 = vmatprep.subr.mxu0 0.0
    %230 = vmatpush2.msra.mxu0 0.0
    %231 = vmatprep.subr.mxu0 0.0
    %232 = vmatpush2.msra.mxu0 0.0
    %233 = vmatprep.subr.mxu0 0.0
    %234 = vmatpush2.msra.mxu0 0.0
    %235 = vmatprep.subr.mxu0 0.0
    %236 = vmatpush2.msra.mxu0 0.0
    %237 = vmatprep.subr.mxu0 0.0
    %238 = vmatpush2.msra.mxu0 0.0
    %239 = vmatprep.subr.mxu0 0.0
    %240 = vmatpush2.msra.mxu0 0.0
    %241 = vmatprep.subr.mxu0 0.0
    %242 = vmatpush2.msra.mxu0 0.0
    %243 = vmatprep.subr.mxu0 0.0
    %244 = vmatpush2.msra.mxu0 0.0
    %245 = vmatprep.subr.mxu0 0.0
    %246 = vmatpush2.msra.mxu0 0.0
    %247 = vmatprep.subr.mxu0 0.0
    %248 = vmatpush2.msra.mxu0 0.0
    %249 = vmatprep.subr.mxu0 0.0
    %250 = vmatpush2.msra.mxu0 0.0
    %251 = vmatprep.subr.mxu0 0.0
    %252 = vmatpush2.msra.mxu0 0.0
    %253 = vmatprep.subr.mxu0 0.0
    %254 = vmatpush2.msra.mxu0 0.0
    %255 = vmatprep.subr.mxu0 0.0
    %256 = vmatpush2.msra.mxu0 0.0
    %257 = vmatprep.subr.mxu0 0.0
    %258 = vmatpush2.msra.mxu0 0.0
    %259 = vmatprep.subr.mxu0 0.0
    %260 = vmatpush2.msra.mxu0 0.0
    %261 = vmatprep.mubr.f32.mxu0 0.0
    %262 = vmatmul.mubr.f32.gmra.mxu0 %v180
    %v263 = vpop.f32.mrf.mxu0
    %v264 = vadd.f32 0.0, %v263
    %v265 = vpop.f32.mrf.mxu0
    %266 = vdwg.mxu0
    %v267 = vrot.slane %v264, 4
    %v268 = vadd.f32 %v264, %v267
    %v269 = vrot.slane %v268, 2
    %v270 = vadd.f32 %v268, %v269
    %v271 = vrot.slane %v270, 1
    %v272 = vadd.f32 %v270, %v271
    %v273 = vmul.f32 %v272, 0.125
    %v274 = vsub.f32 %v264, %v273
    %v275 = vmul.f32 %v274, %v274
    %v276 = vrot.slane %v275, 4
    %v277 = vadd.f32 %v275, %v276
    %v278 = vrot.slane %v277, 2
    %v279 = vadd.f32 %v277, %v278
    %v280 = vrot.slane %v279, 1
    %v281 = vadd.f32 %v279, %v280
    %v282 = vmul.f32 %v281, 0.125
    %v283 = vld [vmem:[%s5] sm:$0x1]
    %v284 = vadd.f32 %v282, 1e-05
    %v285 = vrsqrt.pop %v284
    %v286 = vmul.f32 %v283, %v285
    %v288 = vlaneseq
    %v289 = vshrl.u32 %v288, 7
    %v290 = vsub.s32 0, %v289
    %v291 = vrot.slane %v286, %v290
    %v293 = vmul.f32 %v274, %v291
    %v294 = vld [vmem:[%s6] sm:$0x1]
    %v296 = vlaneseq
    %v297 = vshrl.u32 %v296, 7
    %v298 = vsub.s32 0, %v297
    %v299 = vrot.slane %v294, %v298
    %v301 = vadd.f32 %v293, %v299
    %v302 = vmax.f32 %v301, 0.0
    %303 = vst [vmem:[#allocation8] sm:$0xff] %v302
    // Predicated region
    $region42: #{tpu_custom_call.1} parent=1 // pred_check
      _
    $region43: #{tpu_custom_call.1} parent=1 // pred_check_branch
      %305 = sbr.rel (0) target = $region45
    $region44: #{tpu_custom_call.1} parent=1 // pred_region
      %s307 = ssub.s32 128, 128
      %308 = vsyncadd [#allocation4], %s307
      %s310 = sshll.u32 [#allocation8], 4
      %s311 = int_to_ptr.vmem [resolvable:$true] %s310
      %313 = dma.vmem_to_hbm [thread:$0]  %s311, 128, %s7, [#allocation4]
    $region45: #{tpu_custom_call.1} parent=1 // pred_fallthru
      _
    // Predicated region
    $region46: #{tpu_custom_call.1} parent=1 // pred_check
      _
    $region47: #{tpu_custom_call.1} parent=1 // pred_check_branch
      %315 = sbr.rel (0) target = $region49
    $region48: #{tpu_custom_call.1} parent=1 // pred_region
      %316 = dma.done [#allocation4], 128
    $region49: #{tpu_custom_call.1} parent=1 // pred_fallthru
      _
    %317 = vsyncpa [#allocation3], 1
    %318 = vsyncpa [#allocation6], 1
    %319 = vsyncpa [#allocation4], 1

</llo_original>
